<compile_context>
chip_gen: v7x
topology: tpu7x:2x2x1
jax: 0.10.0
libtpu: 0.0.40
codegen_flags: <defaults>
</compile_context>

<pallas_src>
import functools

import jax
import jax.numpy as jnp
from jax.experimental import pallas as pl
from jax.experimental.pallas import tpu as pltpu


def _layernorm_kernel(x_ref, alpha_ref, bias_ref, o_ref, *, eps: float, features: int):
    x = x_ref[...].astype(jnp.float32)                      # (tr, F)

    # Fused one-pass statistics: two independent cross-lane reductions.
    n = jnp.float32(features)
    s = jnp.sum(x, axis=-1, keepdims=True)                  # (tr, 1)
    sq = jnp.sum(x * x, axis=-1, keepdims=True)             # (tr, 1)
    mean = s * (1.0 / n)
    # Unbiased variance (torch.std default divides by N-1).
    # NOTE: features == 1 gives a 0 divisor -> NaN, same as torch.std on one element.
    var = jnp.maximum(sq - n * mean * mean, 0.0) / jnp.float32(features - 1)
    std = jnp.sqrt(var)

    # Per-row reciprocal on the EUP, broadcast by the VPU multiplies below.
    inv = pl.reciprocal(std + jnp.float32(eps), approx=False)   # (tr, 1)

    alpha = alpha_ref[...].astype(jnp.float32)              # (1, F)
    bias = bias_ref[...].astype(jnp.float32)                # (1, F)

    out = (x - mean) * inv * alpha + bias
    o_ref[...] = out.astype(o_ref.dtype)


def _pick_row_tile(rows: int, features: int, itemsize: int,
                   target_tile_bytes: int = 2 * 1024 * 1024) -> int:
    """Row tile: ~2 MiB of input per grid step, multiple of 8, capped at 1024 rows,
    and never (much) larger than the row count itself."""
    rt = target_tile_bytes // max(1, features * itemsize)
    rt = max(8, (rt // 8) * 8)
    rt = min(rt, 1024)
    rows_pad8 = ((rows + 7) // 8) * 8
    rt = min(rt, rows_pad8)
    return max(8, rt)


def layer_norm_pallas(x, alpha, bias, eps=1e-6, row_tile=None):
    """x: (..., F); alpha, bias: (F,)."""
    orig_shape = x.shape
    F = orig_shape[-1]
    x2 = x.reshape(-1, F)                                   # (R, F)
    R = x2.shape[0]

    if row_tile is None:
        row_tile = _pick_row_tile(R, F, jnp.dtype(x2.dtype).itemsize)
    row_tile = max(8, (int(row_tile) // 8) * 8)             # sublane-aligned

    # Pad rows up to a multiple of the tile (padded rows are discarded below).
    R_pad = pl.cdiv(R, row_tile) * row_tile
    if R_pad != R:
        x2 = jnp.pad(x2, ((0, R_pad - R), (0, 0)))

    alpha2 = alpha.reshape(1, F)
    bias2 = bias.reshape(1, F)

    kernel = functools.partial(_layernorm_kernel, eps=float(eps), features=int(F))

    out2 = pl.pallas_call(
        kernel,
        out_shape=jax.ShapeDtypeStruct((R_pad, F), x.dtype),
        grid_spec=pltpu.PrefetchScalarGridSpec(
            num_scalar_prefetch=0,
            grid=(R_pad // row_tile,),
            in_specs=[
                pl.BlockSpec((row_tile, F), lambda i: (i, 0)),
                pl.BlockSpec((1, F), lambda i: (0, 0)),
                pl.BlockSpec((1, F), lambda i: (0, 0)),
            ],
            out_specs=pl.BlockSpec((row_tile, F), lambda i: (i, 0)),
        ),
        compiler_params=pltpu.CompilerParams(
            dimension_semantics=("parallel",),        # megacore sharding on v7x
            vmem_limit_bytes=32 * 1024 * 1024,        # headroom; safe on v5e/v6e/v7x
        ),
    )(x2, alpha2, bias2)

    if R_pad != R:
        out2 = out2[:R]
    return out2.reshape(orig_shape)

    # TODO(synk): for extremely large F (>=32K) a second grid axis over F with an
    # online mean/var accumulator would be needed; not required for typical sizes.


def layer_norm_ref(x, alpha, bias, eps=1e-6):
    xf = x.astype(jnp.float32)
    mean = jnp.mean(xf, axis=-1, keepdims=True)
    std = jnp.std(xf, axis=-1, keepdims=True, ddof=1)       # unbiased, matching torch.std
    return (alpha * (xf - mean) / (std + eps) + bias).astype(x.dtype)


if __name__ == "__main__":
    key = jax.random.PRNGKey(0)
    batch, seq, features = 2, 8, 32

    x = jax.random.normal(key, (batch, seq, features), dtype=jnp.float32)
    # Deterministic parameter init matching nn.Parameter(torch.ones/zeros(features))
    alpha = jnp.ones((features,), dtype=jnp.float32)
    bias = jnp.zeros((features,), dtype=jnp.float32)

    out = layer_norm_pallas(x, alpha, bias, eps=1e-6)
    out = jax.block_until_ready(out)

    ref = layer_norm_ref(x, alpha, bias, eps=1e-6)
    assert out.shape == x.shape
    assert jnp.allclose(out, ref, atol=1e-5, rtol=1e-5), "mismatch vs reference"

    # Also exercise the padding / multi-step-grid path with a non-tile-multiple row count.
    x_big = jax.random.normal(jax.random.PRNGKey(1), (3, 37, features), dtype=jnp.float32)
    out_big = jax.block_until_ready(
        layer_norm_pallas(x_big, alpha, bias, eps=1e-6, row_tile=16))
    ref_big = layer_norm_ref(x_big, alpha, bias, eps=1e-6)
    assert jnp.allclose(out_big, ref_big, atol=1e-5, rtol=1e-5), "mismatch (padded path)"

    print("KERNEL_OK")
</pallas_src>

<mosaic_0001>
module attributes {stable_mosaic.version = 11 : i64} {
  func.func @_layernorm_kernel(%arg0: i32, %arg1: memref<16x32xf32, #tpu.memory_space<vmem>>, %arg2: memref<1x32xf32, #tpu.memory_space<vmem>>, %arg3: memref<1x32xf32, #tpu.memory_space<vmem>>, %arg4: memref<16x32xf32, #tpu.memory_space<vmem>>) attributes {dimension_semantics = [#tpu.dimension_semantics<parallel>], iteration_bounds = array<i64: 1>, scalar_prefetch = 0 : i64, scratch_operands = 0 : i64, tpu.core_type = #tpu.core_type<tc>, window_params = [{transform_indices = @transform_0, window_bounds = array<i64: 16, 32>}, {pipeline_mode = #tpu.pipeline_mode<synchronous>, transform_indices = @transform_1, window_bounds = array<i64: 1, 32>}, {pipeline_mode = #tpu.pipeline_mode<synchronous>, transform_indices = @transform_2, window_bounds = array<i64: 1, 32>}, {transform_indices = @transform_3, window_bounds = array<i64: 16, 32>}]} {
    %c0 = arith.constant 0 : index
    %c0_0 = arith.constant 0 : index
    %0 = vector.load %arg1[%c0, %c0_0] : memref<16x32xf32, #tpu.memory_space<vmem>>, vector<16x32xf32>
    %cst = arith.constant dense<0.000000e+00> : vector<16xf32>
    %1 = vector.multi_reduction <add>, %0, %cst [1] : vector<16x32xf32> to vector<16xf32>
    %2 = vector.shape_cast %1 : vector<16xf32> to vector<16x1xf32>
    %3 = arith.mulf %0, %0 : vector<16x32xf32>
    %cst_1 = arith.constant dense<0.000000e+00> : vector<16xf32>
    %4 = vector.multi_reduction <add>, %3, %cst_1 [1] : vector<16x32xf32> to vector<16xf32>
    %5 = vector.shape_cast %4 : vector<16xf32> to vector<16x1xf32>
    %cst_2 = arith.constant 1.000000e+00 : f32
    %cst_3 = arith.constant 3.200000e+01 : f32
    %6 = arith.divf %cst_2, %cst_3 : f32
    %7 = vector.broadcast %6 : f32 to vector<16x1xf32>
    %8 = arith.mulf %2, %7 : vector<16x1xf32>
    %cst_4 = arith.constant 3.200000e+01 : f32
    %9 = vector.broadcast %cst_4 : f32 to vector<16x1xf32>
    %10 = arith.mulf %9, %8 : vector<16x1xf32>
    %11 = arith.mulf %10, %8 : vector<16x1xf32>
    %12 = arith.subf %5, %11 : vector<16x1xf32>
    %cst_5 = arith.constant 0.000000e+00 : f32
    %13 = vector.broadcast %cst_5 : f32 to vector<16x1xf32>
    %14 = arith.maximumf %12, %13 : vector<16x1xf32>
    %cst_6 = arith.constant 3.100000e+01 : f32
    %15 = vector.broadcast %cst_6 : f32 to vector<16x1xf32>
    %16 = arith.divf %14, %15 : vector<16x1xf32>
    %17 = math.sqrt %16 : vector<16x1xf32>
    %cst_7 = arith.constant 9.99999997E-7 : f32
    %18 = vector.broadcast %cst_7 : f32 to vector<16x1xf32>
    %19 = arith.addf %17, %18 : vector<16x1xf32>
    %20 = tpu.reciprocal %19 : vector<16x1xf32> -> vector<16x1xf32>
    %c0_8 = arith.constant 0 : index
    %c0_9 = arith.constant 0 : index
    %21 = vector.load %arg2[%c0_8, %c0_9] : memref<1x32xf32, #tpu.memory_space<vmem>>, vector<1x32xf32>
    %c0_10 = arith.constant 0 : index
    %c0_11 = arith.constant 0 : index
    %22 = vector.load %arg3[%c0_10, %c0_11] : memref<1x32xf32, #tpu.memory_space<vmem>>, vector<1x32xf32>
    %23 = vector.broadcast %8 : vector<16x1xf32> to vector<16x32xf32>
    %24 = arith.subf %0, %23 : vector<16x32xf32>
    %25 = vector.broadcast %20 : vector<16x1xf32> to vector<16x32xf32>
    %26 = arith.mulf %24, %25 : vector<16x32xf32>
    %27 = vector.broadcast %21 : vector<1x32xf32> to vector<16x32xf32>
    %28 = arith.mulf %26, %27 : vector<16x32xf32>
    %29 = vector.broadcast %22 : vector<1x32xf32> to vector<16x32xf32>
    %30 = arith.addf %28, %29 : vector<16x32xf32>
    %c0_12 = arith.constant 0 : index
    %c0_13 = arith.constant 0 : index
    %31 = vector.load %arg4[%c0_12, %c0_13] : memref<16x32xf32, #tpu.memory_space<vmem>>, vector<16x32xf32>
    tpu.vector_store %arg4[%c0_12, %c0_13], %30 {strides = array<i32>} : memref<16x32xf32, #tpu.memory_space<vmem>>, vector<16x32xf32>,
    return
  }
  func.func @transform_0(%arg0: i32) -> (i32, i32) {
    %c0_i32 = arith.constant 0 : i32
    %c0_i32_0 = arith.constant 0 : i32
    return %arg0, %c0_i32 : i32, i32
  }
  func.func @transform_1(%arg0: i32) -> (i32, i32) {
    %c0_i32 = arith.constant 0 : i32
    %c0_i32_0 = arith.constant 0 : i32
    %c0_i32_1 = arith.constant 0 : i32
    return %c0_i32, %c0_i32_0 : i32, i32
  }
  func.func @transform_2(%arg0: i32) -> (i32, i32) {
    %c0_i32 = arith.constant 0 : i32
    %c0_i32_0 = arith.constant 0 : i32
    %c0_i32_1 = arith.constant 0 : i32
    return %c0_i32, %c0_i32_0 : i32, i32
  }
  func.func @transform_3(%arg0: i32) -> (i32, i32) {
    %c0_i32 = arith.constant 0 : i32
    %c0_i32_0 = arith.constant 0 : i32
    return %arg0, %c0_i32 : i32, i32
  }
}

</mosaic_0001>

<llo_original>
// kernel: tpu_custom_call.1
$region0: #{tpu_custom_call.1}
  #allocation0 [shape = 'u32[]', space=smem, size = 0x4, offset = 0x4, fixed_abs, tag = 'smem constant byte address 0x4 - core index']
  #allocation1 [shape = 'u32[144,128]{1,0:T(1,128)}', space=vmem, size = 0x12000, scoped, tag = 'internal scratch']
  %s0 = inlined_call_operand.hbm [shape: f32[16,32], index: 0, kind: input, shape index: {}]
  %s1 = inlined_call_operand.vmem [shape: f32[1,32], index: 1, kind: input, shape index: {}]
  %s2 = inlined_call_operand.vmem [shape: f32[1,32], index: 2, kind: input, shape index: {}]
  %s3 = inlined_call_operand.hbm [shape: f32[16,32], index: 3, kind: output, shape index: {}]
  %s4 = sld [smem:[#allocation0]]
  $region26: #{tpu_custom_call.1} parent=0
    _
  %s6 = ssub.s32 1, %s4
  %s7 = scalar_select 0, %s6, %s4
  $region1: #{tpu_custom_call.1} parent=0
    #allocation2 [shape = 'u8[8192]{0}', space=vmem, size = 0x2000, scoped, tag = 'input window, operand 0, single buffered']
    #allocation3 [shape = 's32[1]{0}', space=sflag, size = 0x4, scoped, tag = 'scoped memory for tpu_custom_call.1']
    #allocation4 [shape = 's32[1]{0}', space=sflag, size = 0x4, scoped, tag = 'scoped memory for tpu_custom_call.1']
    #allocation5 [shape = 'u8[8192]{0}', space=vmem, size = 0x2000, scoped, tag = 'output window, operand 0, single buffered']
    %8 = vsyncpa [#allocation3], 0
    %9 = vsyncpa [#allocation4], 0
    // Predicated region
    $region2: #{tpu_custom_call.1} parent=1 // pred_check
      _
    $region3: #{tpu_custom_call.1} parent=1 // pred_check_branch
      %11 = sbr.rel (0) target = $region5
    $region4: #{tpu_custom_call.1} parent=1 // pred_region
      %s13 = ssub.s32 256, 256
      %14 = vsyncadd [#allocation3], %s13
      %s15 = sshll.u32 [#allocation2], 4
      %s16 = int_to_ptr.vmem [resolvable:$true] %s15
      %21 = dma.hbm_to_vmem [thread:$0]  %s0, 256, %s16, [#allocation3], 128, 128, 8
    $region5: #{tpu_custom_call.1} parent=1 // pred_fallthru
      _
    // Predicated region
    $region6: #{tpu_custom_call.1} parent=1 // pred_check
      _
    $region7: #{tpu_custom_call.1} parent=1 // pred_check_branch
      %23 = sbr.rel (0) target = $region9
    $region8: #{tpu_custom_call.1} parent=1 // pred_region
      _
    $region9: #{tpu_custom_call.1} parent=1 // pred_fallthru
      _
    // Predicated region
    $region10: #{tpu_custom_call.1} parent=1 // pred_check
      _
    $region11: #{tpu_custom_call.1} parent=1 // pred_check_branch
      %25 = sbr.rel (0) target = $region13
    $region12: #{tpu_custom_call.1} parent=1 // pred_region
      _
    $region13: #{tpu_custom_call.1} parent=1 // pred_fallthru
      _
    // Predicated region
    $region14: #{tpu_custom_call.1} parent=1 // pred_check
      _
    $region15: #{tpu_custom_call.1} parent=1 // pred_check_branch
      %27 = sbr.rel (0) target = $region17
    $region16: #{tpu_custom_call.1} parent=1 // pred_region
      %28 = dma.done [#allocation3], 256
    $region17: #{tpu_custom_call.1} parent=1 // pred_fallthru
      _
    %v29 = vld [vmem:[#allocation2] sm:$0xff]
    %v30 = vld [vmem:[#allocation2 + $0x8] sm:$0xff]
    %vm31 = vcmask 261120
    %v32 = vsel %vm31, %v29, 0.0
    %33 = vadd.xlane.f32.xlu0 %v32
    %v34 = vpop.xlane.xlu0 %33
    %v35 = vsel %vm31, %v30, 0.0
    %36 = vadd.xlane.f32.xlu0 %v35
    %v37 = vpop.xlane.xlu0 %36
    %v38 = vmul.f32 %v29, %v29
    %v39 = vmul.f32 %v30, %v30
    %v40 = vsel %vm31, %v38, 0.0
    %41 = vadd.xlane.f32.xlu0 %v40
    %v42 = vpop.xlane.xlu0 %41
    %v43 = vsel %vm31, %v39, 0.0
    %44 = vadd.xlane.f32.xlu0 %v43
    %v45 = vpop.xlane.xlu0 %44
    %v46 = vmul.f32 %v34, 0.03125
    %v47 = vmul.f32 %v37, 0.03125
    %v48 = vmul.f32 %v46, 32.0
    %v49 = vmul.f32 %v47, 32.0
    %v50 = vmul.f32 %v48, %v46
    %v51 = vmul.f32 %v49, %v47
    %v52 = vsub.f32 %v42, %v50
    %v53 = vsub.f32 %v45, %v51
    %v54 = vmax.f32 %v52, 0.0
    %v55 = vmax.f32 %v53, 0.0
    %v56 = vrcp.pop 31.0
    %v57 = vmul.f32 %v54, %v56
    %v58 = vmul.f32 %v55, %v56
    %v59 = vrsqrt.pop %v57
    %v60 = vmul.f32 %v57, %v59
    %vm61 = vcmp.eq.f32.partialorder %v57, inf
    %v62 = vsel %vm61, %v57, %v60
    %vm63 = vcmp.eq.f32.partialorder %v57, 0.0
    %v64 = vand.u32 %v57, 2147483648
    %v65 = vsel %vm63, %v64, %v62
    %v66 = vrsqrt.pop %v58
    %v67 = vmul.f32 %v58, %v66
    %vm68 = vcmp.eq.f32.partialorder %v58, inf
    %v69 = vsel %vm68, %v58, %v67
    %vm70 = vcmp.eq.f32.partialorder %v58, 0.0
    %v71 = vand.u32 %v58, 2147483648
    %v72 = vsel %vm70, %v71, %v69
    %v73 = vadd.f32 %v65, 1e-06
    %v74 = vadd.f32 %v72, 1e-06
    %v75 = vrcp.pop %v73
    %v76 = vrcp.pop %v74
    %v77 = vld [vmem:[%s1] sm:$0x1]
    %v78 = vld [vmem:[%s2] sm:$0x1]
    %v79 = vsub.f32 %v29, %v46
    %v80 = vsub.f32 %v30, %v47
    %v81 = vmul.f32 %v79, %v75
    %v82 = vmul.f32 %v80, %v76
    %v84 = vlaneseq
    %v85 = vshrl.u32 %v84, 7
    %v86 = vsub.s32 0, %v85
    %v87 = vrot.slane %v77, %v86
    %v89 = vmul.f32 %v81, %v87
    %v90 = vmul.f32 %v82, %v87
    %v92 = vlaneseq
    %v93 = vshrl.u32 %v92, 7
    %v94 = vsub.s32 0, %v93
    %v95 = vrot.slane %v78, %v94
    %v97 = vadd.f32 %v89, %v95
    %v98 = vadd.f32 %v90, %v95
    %99 = vst.msk [vmem:[#allocation5] sm:$0xff] %vm31, %v97
    %100 = vst.msk [vmem:[#allocation5 + $0x8] sm:$0xff] %vm31, %v98
    // Predicated region
    $region18: #{tpu_custom_call.1} parent=1 // pred_check
      _
    $region19: #{tpu_custom_call.1} parent=1 // pred_check_branch
      %102 = sbr.rel (0) target = $region21
    $region20: #{tpu_custom_call.1} parent=1 // pred_region
      %s104 = ssub.s32 256, 256
      %105 = vsyncadd [#allocation4], %s104
      %s106 = sshll.u32 [#allocation5], 4
      %s107 = int_to_ptr.vmem [resolvable:$true] %s106
      %112 = dma.vmem_to_hbm [thread:$0]  %s107, 256, %s3, [#allocation4], 128, 128, 8
    $region21: #{tpu_custom_call.1} parent=1 // pred_fallthru
      _
    // Predicated region
    $region22: #{tpu_custom_call.1} parent=1 // pred_check
      _
    $region23: #{tpu_custom_call.1} parent=1 // pred_check_branch
      %114 = sbr.rel (0) target = $region25
    $region24: #{tpu_custom_call.1} parent=1 // pred_region
      %115 = dma.done [#allocation4], 256
    $region25: #{tpu_custom_call.1} parent=1 // pred_fallthru
      _
    %116 = vsyncpa [#allocation3], 1
    %117 = vsyncpa [#allocation4], 1

</llo_original>
